<compile_context>
chip_gen: v7x
topology: tpu7x:2x2x1
jax: 0.10.0
libtpu: 0.0.40
codegen_flags: <defaults>
</compile_context>

<pallas_src>
import functools

import jax
import jax.numpy as jnp
import numpy as np
from jax import lax
from jax.experimental import pallas as pl
from jax.experimental.pallas import tpu as pltpu


def _round_up(x, m):
    return (x + m - 1) // m * m


def _textcnn_kernel(batch, t_stride,
                    tok_ref, tab_ref, w2_ref, b_ref, mask_ref,
                    lw_ref, lb_ref, out_ref, x_buf):
    """Fused gather + conv-stack + bias + masked max-pool + ReLU + linear.

    tok_ref : (rows_x, 1) int32   row -> token id (-1 for padding rows)
    tab_ref : (VP, E)             lane-padded embedding table (compute dtype)
    w2_ref  : (max_ks*E, NP)      im2col-packed conv weights (NP = padded 3*K)
    b_ref   : (1, NP)  f32        packed conv biases
    mask_ref: (T, NP)  f32        1.0 at valid (position-in-block, channel)
    lw_ref  : (NP, CP)            padded classifier weight
    lb_ref  : (1, CP)  f32        padded classifier bias
    out_ref : (BP, CP) f32        lane-dense logits slab (BP = round_up(B, 8))
    x_buf   : (rows_x, E)         scratch: padded (batch, position) embeddings
    """
    rows_x, emb = x_buf.shape
    vocab_p = tab_ref.shape[0]
    n_packed = w2_ref.shape[1]
    max_ks = w2_ref.shape[0] // emb
    rows = batch * t_stride
    bp = out_ref.shape[0]

    # ---- in-kernel embedding gather: one-hot @ table on the MXU ----
    lane = lax.broadcasted_iota(jnp.int32, (rows_x, vocab_p), 1)
    onehot = jnp.where(lane == tok_ref[...], 1.0, 0.0).astype(x_buf.dtype)
    x_buf[...] = jnp.dot(onehot, tab_ref[...],
                         preferred_element_type=jnp.float32).astype(x_buf.dtype)

    # ---- all convs / taps / batches fused into ONE fat matmul (im2col) ----
    xcat = jnp.concatenate(
        [x_buf[j:j + rows, :] for j in range(max_ks)], axis=1)     # (rows, max_ks*E)
    acc = jnp.dot(xcat, w2_ref[...], preferred_element_type=jnp.float32)

    # ---- bias + precomputed validity mask + per-batch max-pool ----
    # Bias MUST be added before masking (masked positions become 0, and the
    # trailing ReLU clamp makes the 0-sentinel equivalent to max-of-ReLU).
    acc = (acc.reshape(batch, t_stride, n_packed) + b_ref[...]) * mask_ref[...]
    feats = jnp.maximum(jnp.max(acc, axis=1), 0.0)                 # (B, NP) f32
    if bp > batch:                                                 # sublane-pad to BP
        feats = jnp.concatenate(
            [feats, jnp.zeros((bp - batch, n_packed), feats.dtype)], axis=0)

    # ---- classifier: lane-dense (BP, NP) @ (NP, CP) ----
    logits = jnp.dot(feats.astype(lw_ref.dtype), lw_ref[...],
                     preferred_element_type=jnp.float32) + lb_ref[...]
    out_ref[...] = logits.astype(out_ref.dtype)


def pack_params(params, kernel_sizes, seq_len, compute_dtype=jnp.bfloat16):
    """One-time packing of weights/biases/mask/table into kernel layouts.

    Hoisted out of the per-call forward path (host-side numpy)."""
    kernel_sizes = tuple(kernel_sizes)
    emb_table = np.asarray(params["embedding"], np.float32)         # (V, E)
    V, E = emb_table.shape
    K = int(params["conv_b_0"].shape[-1])
    C = int(params["lin_b"].shape[-1])
    feature_size = len(kernel_sizes) * K

    max_ks = max(kernel_sizes)
    max_pad = max(ks // 2 for ks in kernel_sizes)
    T = _round_up(seq_len + 2 * max_pad, 8)          # per-batch row stride
    NP = _round_up(max(feature_size, 1), 128)        # lane-padded conv channels
    CP = _round_up(max(C, 1), 128)                   # lane-padded logits
    VP = _round_up(V, 128)                           # lane-padded vocab (one-hot)

    # Static assert (review's correctness concern): every valid conv window
    # stays strictly inside its own batch block of the packed layout.
    for ks in kernel_sizes:
        assert seq_len + max_pad + ks // 2 <= T, "conv window exits batch block"

    tab = np.zeros((VP, E), np.float32)
    tab[:V] = emb_table

    # im2col packing: row j*E + e, column i*K + k holds conv_w_i[j, e, k];
    # taps beyond a conv's kernel size and unused columns stay zero.
    w2 = np.zeros((max_ks * E, NP), np.float32)
    b = np.zeros((1, NP), np.float32)
    for i, ks in enumerate(kernel_sizes):
        w = np.asarray(params[f"conv_w_{i}"], np.float32)            # (ks, E, K)
        for j in range(ks):
            w2[j * E:(j + 1) * E, i * K:(i + 1) * K] = w[j]
        b[:, i * K:(i + 1) * K] = np.asarray(params[f"conv_b_{i}"], np.float32)

    # Compile-time validity mask over (position-in-block, packed channel).
    mask = np.zeros((T, NP), np.float32)
    for i, ks in enumerate(kernel_sizes):
        pad = ks // 2
        off = max_pad - pad
        l_out = seq_len + 2 * pad - ks + 1
        mask[off:off + l_out, i * K:(i + 1) * K] = 1.0

    lw = np.zeros((NP, CP), np.float32)
    lw[:feature_size, :C] = np.asarray(params["lin_w"], np.float32)
    lb = np.zeros((1, CP), np.float32)
    lb[:, :C] = np.asarray(params["lin_b"], np.float32)

    return {
        "table": jnp.asarray(tab, compute_dtype),
        "w2": jnp.asarray(w2, compute_dtype),
        "b": jnp.asarray(b, jnp.float32),
        "mask": jnp.asarray(mask, jnp.float32),
        "lw": jnp.asarray(lw, compute_dtype),
        "lb": jnp.asarray(lb, jnp.float32),
        "cfg": dict(kernel_sizes=kernel_sizes, seq_len=seq_len, E=E, K=K, C=C,
                    V=V, VP=VP, NP=NP, CP=CP, T=T, max_ks=max_ks,
                    max_pad=max_pad, feature_size=feature_size),
    }


def textcnn_forward(sentence, packed):
    """sentence: int32 (B, L).  Returns float32 (B, num_categories)."""
    cfg = packed["cfg"]
    B, L = sentence.shape
    assert L == cfg["seq_len"], "pack_params was built for a different seq_len"
    T, max_pad, max_ks = cfg["T"], cfg["max_pad"], cfg["max_ks"]
    E, NP, CP, C = cfg["E"], cfg["NP"], cfg["CP"], cfg["C"]

    rows = B * T
    rows_x = _round_up(rows + max_ks - 1, 8)
    BP = _round_up(B, 8)                      # sublane-padded output batch
    assert rows + max_ks - 1 <= rows_x

    # Row -> token-id map for the padded layout: row b*T + max_pad + l holds
    # sentence[b, l]; every other row is -1 (its one-hot is all-zero, so it
    # gathers a zero embedding row, which doubles as conv zero-padding).
    # F.dropout on embeddings / features: inference-mode identity.
    # TODO(synk): training-mode dropout (random masking) not implemented.
    row_tok = jnp.pad(sentence.astype(jnp.int32),
                      ((0, 0), (max_pad, T - L - max_pad)), constant_values=-1)
    row_tok = jnp.pad(row_tok.reshape(rows), (0, rows_x - rows),
                      constant_values=-1).reshape(rows_x, 1)

    kernel = functools.partial(_textcnn_kernel, B, T)
    # TODO(synk): at realistic B/L/E add a grid over batch / sequence chunks
    # with per-block BlockSpecs and dimension_semantics=("parallel", ...)
    # instead of whole-operand VMEM blocks (mandatory on v7x's 64 MiB VMEM).
    out = pl.pallas_call(
        kernel,
        out_shape=jax.ShapeDtypeStruct((BP, CP), jnp.float32),
        in_specs=[pl.BlockSpec(memory_space=pltpu.MemorySpace.VMEM)] * 7,
        out_specs=pl.BlockSpec(memory_space=pltpu.MemorySpace.VMEM),
        scratch_shapes=[pltpu.VMEM((rows_x, E), packed["table"].dtype)],
    )(row_tok, packed["table"], packed["w2"], packed["b"], packed["mask"],
      packed["lw"], packed["lb"])
    return out[:B, :C]


def init_params(key, vocab_size, embed_size, kernel_sizes, kernel_num,
                num_categories):
    keys = jax.random.split(key, 2 + 2 * len(kernel_sizes) + 2)
    params = {}
    params["embedding"] = jax.random.normal(
        keys[0], (vocab_size, embed_size), jnp.float32) * 0.1
    for i, ks in enumerate(kernel_sizes):
        params[f"conv_w_{i}"] = jax.random.normal(
            keys[2 + 2 * i], (ks, embed_size, kernel_num), jnp.float32) * 0.1
        params[f"conv_b_{i}"] = jax.random.normal(
            keys[3 + 2 * i], (1, kernel_num), jnp.float32) * 0.1
    feature_size = len(kernel_sizes) * kernel_num
    params["lin_w"] = jax.random.normal(
        keys[-2], (feature_size, num_categories), jnp.float32) * 0.1
    params["lin_b"] = jax.random.normal(
        keys[-1], (1, num_categories), jnp.float32) * 0.1
    return params


def reference_forward(sentence, params, kernel_sizes):
    """Pure-JAX f32 reference with identical math (tap-sum conv decomposition)."""
    emb = jnp.take(params["embedding"], sentence, axis=0)   # (B, L, E)
    B, L, _ = emb.shape
    feats = []
    for i, ks in enumerate(kernel_sizes):
        pad = ks // 2
        xp = jnp.pad(emb, ((0, 0), (pad, pad), (0, 0)))
        l_out = L + 2 * pad - ks + 1
        w = params[f"conv_w_{i}"]                            # (ks, E, K)
        acc = sum(
            jnp.einsum("ble,ek->blk", xp[:, j: j + l_out, :], w[j])
            for j in range(ks)
        )
        acc = jnp.maximum(acc + params[f"conv_b_{i}"][None, :, :], 0.0)
        feats.append(jnp.max(acc, axis=1))                   # (B, K)
    features = jnp.concatenate(feats, axis=-1)
    return features @ params["lin_w"] + params["lin_b"]


if __name__ == "__main__":
    vocab_size = 50
    embed_size = 32
    kernel_sizes = [3, 4, 5]
    kernel_num = 8
    num_categories = 4
    batch, seq_len = 2, 16

    key = jax.random.PRNGKey(0)
    pkey, skey = jax.random.split(key)
    params = init_params(pkey, vocab_size, embed_size, kernel_sizes,
                         kernel_num, num_categories)
    sentence = jax.random.randint(skey, (batch, seq_len), 0, vocab_size,
                                  dtype=jnp.int32)

    # One-time packing (hoisted out of the per-call forward path).
    packed = pack_params(params, kernel_sizes, seq_len,
                         compute_dtype=jnp.bfloat16)

    logits = textcnn_forward(sentence, packed)
    logits = jax.block_until_ready(logits)

    ref = reference_forward(sentence, params, kernel_sizes)
    assert logits.shape == (batch, num_categories)
    # bf16 inputs / f32 accumulation -> loosened tolerance vs the f32 reference.
    assert jnp.allclose(logits, ref, atol=2e-2, rtol=2e-2)

    print("KERNEL_OK")
</pallas_src>

<mosaic_0001>
module attributes {stable_mosaic.version = 11 : i64} {
  func.func @_textcnn_kernel(%arg0: memref<56x1xi32, #tpu.memory_space<vmem>>, %arg1: memref<128x32xbf16, #tpu.memory_space<vmem>>, %arg2: memref<160x128xbf16, #tpu.memory_space<vmem>>, %arg3: memref<1x128xf32, #tpu.memory_space<vmem>>, %arg4: memref<24x128xf32, #tpu.memory_space<vmem>>, %arg5: memref<128x128xbf16, #tpu.memory_space<vmem>>, %arg6: memref<1x128xf32, #tpu.memory_space<vmem>>, %arg7: memref<8x128xf32, #tpu.memory_space<vmem>>, %arg8: memref<56x32xbf16, #tpu.memory_space<vmem>>) attributes {dimension_semantics = [], scalar_prefetch = 0 : i64, scratch_operands = 1 : i64, tpu.core_type = #tpu.core_type<tc>} {
    %0 = tpu.iota {dimensions = array<i32: 1>} : vector<56x128xi32>
    %c0 = arith.constant 0 : index
    %c0_0 = arith.constant 0 : index
    %1 = vector.load %arg0[%c0, %c0_0] : memref<56x1xi32, #tpu.memory_space<vmem>>, vector<56x1xi32>
    %2 = vector.broadcast %1 : vector<56x1xi32> to vector<56x128xi32>
    %3 = arith.cmpi eq, %0, %2 : vector<56x128xi32>
    %cst = arith.constant 1.000000e+00 : f32
    %cst_1 = arith.constant 0.000000e+00 : f32
    %4 = vector.broadcast %cst : f32 to vector<56x128xf32>
    %5 = vector.broadcast %cst_1 : f32 to vector<56x128xf32>
    %6 = arith.select %3, %4, %5 : vector<56x128xi1>, vector<56x128xf32>
    %7 = arith.truncf %6 : vector<56x128xf32> to vector<56x128xbf16>
    %c0_2 = arith.constant 0 : index
    %c0_3 = arith.constant 0 : index
    %8 = vector.load %arg1[%c0_2, %c0_3] : memref<128x32xbf16, #tpu.memory_space<vmem>>, vector<128x32xbf16>
    %cst_4 = arith.constant dense<0.000000e+00> : vector<56x32xf32>
    %9 = tpu.matmul %7, %8, %cst_4 {dimension_numbers = #tpu.dot_dimension_numbers<[1], [0], [0], [1], [0, 0, 1, 1], [], []>} : vector<56x128xbf16>, vector<128x32xbf16>, vector<56x32xf32> -> vector<56x32xf32>
    %10 = arith.truncf %9 : vector<56x32xf32> to vector<56x32xbf16>
    %c0_5 = arith.constant 0 : index
    %c0_6 = arith.constant 0 : index
    %11 = vector.load %arg8[%c0_5, %c0_6] : memref<56x32xbf16, #tpu.memory_space<vmem>>, vector<56x32xbf16>
    tpu.vector_store %arg8[%c0_5, %c0_6], %10 {strides = array<i32>} : memref<56x32xbf16, #tpu.memory_space<vmem>>, vector<56x32xbf16>,
    %c0_7 = arith.constant 0 : index
    %c0_8 = arith.constant 0 : index
    %12 = vector.load %arg8[%c0_7, %c0_8] : memref<56x32xbf16, #tpu.memory_space<vmem>>, vector<48x32xbf16>
    %c1 = arith.constant 1 : index
    %c0_9 = arith.constant 0 : index
    %13 = vector.load %arg8[%c1, %c0_9] : memref<56x32xbf16, #tpu.memory_space<vmem>>, vector<48x32xbf16>
    %c2 = arith.constant 2 : index
    %c0_10 = arith.constant 0 : index
    %14 = vector.load %arg8[%c2, %c0_10] : memref<56x32xbf16, #tpu.memory_space<vmem>>, vector<48x32xbf16>
    %c3 = arith.constant 3 : index
    %c0_11 = arith.constant 0 : index
    %15 = vector.load %arg8[%c3, %c0_11] : memref<56x32xbf16, #tpu.memory_space<vmem>>, vector<48x32xbf16>
    %c4 = arith.constant 4 : index
    %c0_12 = arith.constant 0 : index
    %16 = vector.load %arg8[%c4, %c0_12] : memref<56x32xbf16, #tpu.memory_space<vmem>>, vector<48x32xbf16>
    %17 = tpu.concatenate %12, %13, %14, %15, %16 in 1 : vector<48x32xbf16>, vector<48x32xbf16>, vector<48x32xbf16>, vector<48x32xbf16>, vector<48x32xbf16> -> vector<48x160xbf16>
    %c0_13 = arith.constant 0 : index
    %c0_14 = arith.constant 0 : index
    %18 = vector.load %arg2[%c0_13, %c0_14] : memref<160x128xbf16, #tpu.memory_space<vmem>>, vector<160x128xbf16>
    %cst_15 = arith.constant dense<0.000000e+00> : vector<48x128xf32>
    %19 = tpu.matmul %17, %18, %cst_15 {dimension_numbers = #tpu.dot_dimension_numbers<[1], [0], [0], [1], [0, 0, 1, 1], [], []>} : vector<48x160xbf16>, vector<160x128xbf16>, vector<48x128xf32> -> vector<48x128xf32>
    %20 = vector.shape_cast %19 : vector<48x128xf32> to vector<2x24x128xf32>
    %c0_16 = arith.constant 0 : index
    %c0_17 = arith.constant 0 : index
    %21 = vector.load %arg3[%c0_16, %c0_17] : memref<1x128xf32, #tpu.memory_space<vmem>>, vector<1x128xf32>
    %22 = vector.shape_cast %21 : vector<1x128xf32> to vector<1x1x128xf32>
    %23 = vector.broadcast %22 : vector<1x1x128xf32> to vector<2x24x128xf32>
    %24 = arith.addf %20, %23 : vector<2x24x128xf32>
    %c0_18 = arith.constant 0 : index
    %c0_19 = arith.constant 0 : index
    %25 = vector.load %arg4[%c0_18, %c0_19] : memref<24x128xf32, #tpu.memory_space<vmem>>, vector<24x128xf32>
    %26 = vector.shape_cast %25 : vector<24x128xf32> to vector<1x24x128xf32>
    %27 = vector.broadcast %26 : vector<1x24x128xf32> to vector<2x24x128xf32>
    %28 = arith.mulf %24, %27 : vector<2x24x128xf32>
    %cst_20 = arith.constant dense<0xFF800000> : vector<2x128xf32>
    %29 = vector.multi_reduction <maximumf>, %28, %cst_20 [1] : vector<2x24x128xf32> to vector<2x128xf32>
    %cst_21 = arith.constant 0.000000e+00 : f32
    %30 = vector.broadcast %cst_21 : f32 to vector<2x128xf32>
    %31 = arith.maximumf %29, %30 : vector<2x128xf32>
    %cst_22 = arith.constant 0.000000e+00 : f32
    %32 = vector.broadcast %cst_22 : f32 to vector<6x128xf32>
    %33 = tpu.concatenate %31, %32 in 0 : vector<2x128xf32>, vector<6x128xf32> -> vector<8x128xf32>
    %34 = arith.truncf %33 : vector<8x128xf32> to vector<8x128xbf16>
    %c0_23 = arith.constant 0 : index
    %c0_24 = arith.constant 0 : index
    %35 = vector.load %arg5[%c0_23, %c0_24] : memref<128x128xbf16, #tpu.memory_space<vmem>>, vector<128x128xbf16>
    %cst_25 = arith.constant dense<0.000000e+00> : vector<8x128xf32>
    %36 = tpu.matmul %34, %35, %cst_25 {dimension_numbers = #tpu.dot_dimension_numbers<[1], [0], [0], [1], [0, 0, 1, 1], [], []>} : vector<8x128xbf16>, vector<128x128xbf16>, vector<8x128xf32> -> vector<8x128xf32>
    %c0_26 = arith.constant 0 : index
    %c0_27 = arith.constant 0 : index
    %37 = vector.load %arg6[%c0_26, %c0_27] : memref<1x128xf32, #tpu.memory_space<vmem>>, vector<1x128xf32>
    %38 = vector.broadcast %37 : vector<1x128xf32> to vector<8x128xf32>
    %39 = arith.addf %36, %38 : vector<8x128xf32>
    %c0_28 = arith.constant 0 : index
    %c0_29 = arith.constant 0 : index
    %40 = vector.load %arg7[%c0_28, %c0_29] : memref<8x128xf32, #tpu.memory_space<vmem>>, vector<8x128xf32>
    tpu.vector_store %arg7[%c0_28, %c0_29], %39 {strides = array<i32>} : memref<8x128xf32, #tpu.memory_space<vmem>>, vector<8x128xf32>,
    return
  }
}

</mosaic_0001>

<llo_original>
// kernel: tpu_custom_call.1
$region0: #{tpu_custom_call.1}
  #allocation0 [shape = 'u32[]', space=smem, size = 0x4, offset = 0x4, fixed_abs, tag = 'smem constant byte address 0x4 - core index']
  #allocation1 [shape = 'u32[144,128]{1,0:T(1,128)}', space=vmem, size = 0x12000, scoped, tag = 'internal scratch']
  #allocation2 [shape = 'bf16[56,32]{1,0:T(8,128)(2,1)}', space=vmem, size = 0x3800, scoped, tag = 'scratch operand']
  %s0 = inlined_call_operand.vmem [shape: s32[56,1], index: 0, kind: input, shape index: {}]
  %s1 = inlined_call_operand.vmem [shape: bf16[128,32], index: 1, kind: input, shape index: {}]
  %s2 = inlined_call_operand.vmem [shape: bf16[160,128], index: 2, kind: input, shape index: {}]
  %s3 = inlined_call_operand.vmem [shape: f32[1,128], index: 3, kind: input, shape index: {}]
  %s4 = inlined_call_operand.hbm [shape: f32[24,128], index: 4, kind: input, shape index: {}]
  %s5 = inlined_call_operand.vmem [shape: bf16[128,128], index: 5, kind: input, shape index: {}]
  %s6 = inlined_call_operand.vmem [shape: f32[1,128], index: 6, kind: input, shape index: {}]
  %s7 = inlined_call_operand.hbm [shape: f32[8,128], index: 7, kind: output, shape index: {}]
  %s8 = sld [smem:[#allocation0]]
  $region42: #{tpu_custom_call.1} parent=0
    _
  %s10 = ssub.s32 1, %s8
  %s11 = scalar_select 0, %s10, %s8
  $region1: #{tpu_custom_call.1} parent=0
    #allocation3 [shape = 'u8[12288]{0}', space=vmem, size = 0x3000, scoped, tag = 'input window, operand 4, single buffered']
    #allocation4 [shape = 's32[1]{0}', space=sflag, size = 0x4, scoped, tag = 'scoped memory for tpu_custom_call.1']
    #allocation5 [shape = 's32[1]{0}', space=sflag, size = 0x4, scoped, tag = 'scoped memory for tpu_custom_call.1']
    #allocation6 [shape = 'u8[4096]{0}', space=vmem, size = 0x1000, scoped, tag = 'output window, operand 0, single buffered']
    %12 = vsyncpa [#allocation4], 0
    %13 = vsyncpa [#allocation5], 0
    // Predicated region
    $region2: #{tpu_custom_call.1} parent=1 // pred_check
      _
    $region3: #{tpu_custom_call.1} parent=1 // pred_check_branch
      %15 = sbr.rel (0) target = $region5
    $region4: #{tpu_custom_call.1} parent=1 // pred_region
      _
    $region5: #{tpu_custom_call.1} parent=1 // pred_fallthru
      _
    // Predicated region
    $region6: #{tpu_custom_call.1} parent=1 // pred_check
      _
    $region7: #{tpu_custom_call.1} parent=1 // pred_check_branch
      %17 = sbr.rel (0) target = $region9
    $region8: #{tpu_custom_call.1} parent=1 // pred_region
      _
    $region9: #{tpu_custom_call.1} parent=1 // pred_fallthru
      _
    // Predicated region
    $region10: #{tpu_custom_call.1} parent=1 // pred_check
      _
    $region11: #{tpu_custom_call.1} parent=1 // pred_check_branch
      %19 = sbr.rel (0) target = $region13
    $region12: #{tpu_custom_call.1} parent=1 // pred_region
      _
    $region13: #{tpu_custom_call.1} parent=1 // pred_fallthru
      _
    // Predicated region
    $region14: #{tpu_custom_call.1} parent=1 // pred_check
      _
    $region15: #{tpu_custom_call.1} parent=1 // pred_check_branch
      %21 = sbr.rel (0) target = $region17
    $region16: #{tpu_custom_call.1} parent=1 // pred_region
      _
    $region17: #{tpu_custom_call.1} parent=1 // pred_fallthru
      _
    // Predicated region
    $region18: #{tpu_custom_call.1} parent=1 // pred_check
      _
    $region19: #{tpu_custom_call.1} parent=1 // pred_check_branch
      %23 = sbr.rel (0) target = $region21
    $region20: #{tpu_custom_call.1} parent=1 // pred_region
      %s25 = ssub.s32 384, 384
      %26 = vsyncadd [#allocation4], %s25
      %s27 = sshll.u32 [#allocation3], 4
      %s28 = int_to_ptr.vmem [resolvable:$true] %s27
      %33 = dma.hbm_to_vmem [thread:$0]  %s4, 384, %s28, [#allocation4], 128, 128, 8
    $region21: #{tpu_custom_call.1} parent=1 // pred_fallthru
      _
    // Predicated region
    $region22: #{tpu_custom_call.1} parent=1 // pred_check
      _
    $region23: #{tpu_custom_call.1} parent=1 // pred_check_branch
      %35 = sbr.rel (0) target = $region25
    $region24: #{tpu_custom_call.1} parent=1 // pred_region
      _
    $region25: #{tpu_custom_call.1} parent=1 // pred_fallthru
      _
    // Predicated region
    $region26: #{tpu_custom_call.1} parent=1 // pred_check
      _
    $region27: #{tpu_custom_call.1} parent=1 // pred_check_branch
      %37 = sbr.rel (0) target = $region29
    $region28: #{tpu_custom_call.1} parent=1 // pred_region
      _
    $region29: #{tpu_custom_call.1} parent=1 // pred_fallthru
      _
    // Predicated region
    $region30: #{tpu_custom_call.1} parent=1 // pred_check
      _
    $region31: #{tpu_custom_call.1} parent=1 // pred_check_branch
      %39 = sbr.rel (0) target = $region33
    $region32: #{tpu_custom_call.1} parent=1 // pred_region
      %40 = dma.done [#allocation4], 384
    $region33: #{tpu_custom_call.1} parent=1 // pred_fallthru
      _
    %v42 = vlaneseq
    %v43 = vand.u32 %v42, 127
    %v44 = vld [vmem:[%s0] sm:$0xff]
    %v45 = vld [vmem:[%s0 + $0x8] sm:$0xff]
    %v46 = vld [vmem:[%s0 + $0x10] sm:$0xff]
    %v47 = vld [vmem:[%s0 + $0x18] sm:$0xff]
    %v48 = vld [vmem:[%s0 + $0x20] sm:$0xff]
    %v49 = vld [vmem:[%s0 + $0x28] sm:$0xff]
    %v50 = vld [vmem:[%s0 + $0x30] sm:$0xff]
    %51 = vset.pattern.permute.xlu0 0
    %52 = vperm.xlu0 %51, %v44
    %v53 = vpop.permute.xlu0 %52
    %54 = vset.pattern.permute.xlu0 0
    %55 = vperm.xlu0 %54, %v45
    %v56 = vpop.permute.xlu0 %55
    %57 = vset.pattern.permute.xlu0 0
    %58 = vperm.xlu0 %57, %v46
    %v59 = vpop.permute.xlu0 %58
    %60 = vset.pattern.permute.xlu0 0
    %61 = vperm.xlu0 %60, %v47
    %v62 = vpop.permute.xlu0 %61
    %63 = vset.pattern.permute.xlu0 0
    %64 = vperm.xlu0 %63, %v48
    %v65 = vpop.permute.xlu0 %64
    %66 = vset.pattern.permute.xlu0 0
    %67 = vperm.xlu0 %66, %v49
    %v68 = vpop.permute.xlu0 %67
    %69 = vset.pattern.permute.xlu0 0
    %70 = vperm.xlu0 %69, %v50
    %v71 = vpop.permute.xlu0 %70
    %vm72 = vcmp.eq.s32.totalorder %v43, %v53
    %vm73 = vcmp.eq.s32.totalorder %v43, %v56
    %vm74 = vcmp.eq.s32.totalorder %v43, %v59
    %vm75 = vcmp.eq.s32.totalorder %v43, %v62
    %vm76 = vcmp.eq.s32.totalorder %v43, %v65
    %vm77 = vcmp.eq.s32.totalorder %v43, %v68
    %vm78 = vcmp.eq.s32.totalorder %v43, %v71
    %v79 = vsel %vm72, 1.0, 0.0
    %v80 = vsel %vm73, 1.0, 0.0
    %v81 = vsel %vm74, 1.0, 0.0
    %v82 = vsel %vm75, 1.0, 0.0
    %v83 = vsel %vm76, 1.0, 0.0
    %v84 = vsel %vm77, 1.0, 0.0
    %v85 = vsel %vm78, 1.0, 0.0
    %v86 = vpack.c.bf16 %v80, %v79
    %v87 = vpack.c.bf16 %v82, %v81
    %v88 = vpack.c.bf16 %v84, %v83
    %v89 = vpack.c.bf16 %v85, %v85
    %v90 = vld [vmem:[%s1] sm:$0xf]
    %v91 = vld [vmem:[%s1 + $0x4] sm:$0xf]
    %v92 = vld [vmem:[%s1 + $0x8] sm:$0xf]
    %v93 = vld [vmem:[%s1 + $0xc] sm:$0xf]
    %v94 = vld [vmem:[%s1 + $0x10] sm:$0xf]
    %v95 = vld [vmem:[%s1 + $0x14] sm:$0xf]
    %v96 = vld [vmem:[%s1 + $0x18] sm:$0xf]
    %v97 = vld [vmem:[%s1 + $0x1c] sm:$0xf]
    %v98 = vld [vmem:[%s1 + $0x20] sm:$0xf]
    %v99 = vld [vmem:[%s1 + $0x24] sm:$0xf]
    %v100 = vld [vmem:[%s1 + $0x28] sm:$0xf]
    %v101 = vld [vmem:[%s1 + $0x2c] sm:$0xf]
    %v102 = vld [vmem:[%s1 + $0x30] sm:$0xf]
    %v103 = vld [vmem:[%s1 + $0x34] sm:$0xf]
    %v104 = vld [vmem:[%s1 + $0x38] sm:$0xf]
    %v105 = vld [vmem:[%s1 + $0x3c] sm:$0xf]
    %v122 = vunpack.c.l.b16 %v90
    %v123 = vunpack.c.l.b16 %v91
    %v124 = vunpack.c.l.b16 %v92
    %v125 = vunpack.c.l.b16 %v93
    %v126 = vunpack.c.l.b16 %v94
    %v127 = vunpack.c.l.b16 %v95
    %v128 = vunpack.c.l.b16 %v96
    %v129 = vunpack.c.l.b16 %v97
    %v130 = vunpack.c.l.b16 %v98
    %v131 = vunpack.c.l.b16 %v99
    %v132 = vunpack.c.l.b16 %v100
    %v133 = vunpack.c.l.b16 %v101
    %v134 = vunpack.c.l.b16 %v102
    %v135 = vunpack.c.l.b16 %v103
    %v136 = vunpack.c.l.b16 %v104
    %v137 = vunpack.c.l.b16 %v105
    %v138 = vpack.c.b16 %v123, %v122
    %v139 = vpack.c.b16 %v125, %v124
    %v140 = vpack.c.b16 %v127, %v126
    %v141 = vpack.c.b16 %v129, %v128
    %v142 = vpack.c.b16 %v131, %v130
    %v143 = vpack.c.b16 %v133, %v132
    %v144 = vpack.c.b16 %v135, %v134
    %v145 = vpack.c.b16 %v137, %v136
    %154 = vmatprep.subr.bf16.mxu0 0
    %155 = vmatpush1.bf16.msra.mxu0 %v138
    %156 = vmatprep.subr.bf16.mxu0 0
    %157 = vmatpush1.bf16.msra.mxu0 %v139
    %158 = vmatprep.subr.bf16.mxu0 0
    %159 = vmatpush1.bf16.msra.mxu0 %v140
    %160 = vmatprep.subr.bf16.mxu0 0
    %161 = vmatpush1.bf16.msra.mxu0 %v141
    %162 = vmatprep.subr.bf16.mxu0 0
    %163 = vmatpush1.bf16.msra.mxu0 %v142
    %164 = vmatprep.subr.bf16.mxu0 0
    %165 = vmatpush1.bf16.msra.mxu0 %v143
    %166 = vmatprep.subr.bf16.mxu0 0
    %167 = vmatpush1.bf16.msra.mxu0 %v144
    %168 = vmatprep.subr.bf16.mxu0 0
    %169 = vmatpush1.bf16.msra.mxu0 %v145
    %170 = vmatprep.subr.bf16.mxu0 0
    %171 = vmatpush1.bf16.msra.mxu0 0
    %172 = vmatprep.subr.bf16.mxu0 0
    %173 = vmatpush1.bf16.msra.mxu0 0
    %174 = vmatprep.subr.bf16.mxu0 0
    %175 = vmatpush1.bf16.msra.mxu0 0
    %176 = vmatprep.subr.bf16.mxu0 0
    %177 = vmatpush1.bf16.msra.mxu0 0
    %178 = vmatprep.subr.bf16.mxu0 0
    %179 = vmatpush1.bf16.msra.mxu0 0
    %180 = vmatprep.subr.bf16.mxu0 0
    %181 = vmatpush1.bf16.msra.mxu0 0
    %182 = vmatprep.subr.bf16.mxu0 0
    %183 = vmatpush1.bf16.msra.mxu0 0
    %184 = vmatprep.subr.bf16.mxu0 0
    %185 = vmatpush1.bf16.msra.mxu0 0
    %186 = vmatprep.mubr.bf16.mxu0 0
    %187 = vmatmul.mubr.bf16.gmra.mrb[0].mxu0 %v86
    %v188 = vpop.f32.mrb[0].mxu0
    %v189 = vadd.f32 0.0, %v188
    %v190 = vpop.f32.mrb[0].mxu0
    %v191 = vpop.f32.mrb[0].mxu0
    %v192 = vadd.f32 0.0, %v191
    %v193 = vpop.f32.mrb[0].mxu0
    %194 = vmatprep.mubr.bf16.mxu0 0
    %195 = vmatmul.mubr.bf16.gmra.mrb[0].mxu0 %v87
    %v196 = vpop.f32.mrb[0].mxu0
    %v197 = vadd.f32 0.0, %v196
    %v198 = vpop.f32.mrb[0].mxu0
    %v199 = vpop.f32.mrb[0].mxu0
    %v200 = vadd.f32 0.0, %v199
    %v201 = vpop.f32.mrb[0].mxu0
    %202 = vmatprep.mubr.bf16.mxu0 0
    %203 = vmatmul.mubr.bf16.gmra.mrb[0].mxu0 %v88
    %v204 = vpop.f32.mrb[0].mxu0
    %v205 = vadd.f32 0.0, %v204
    %v206 = vpop.f32.mrb[0].mxu0
    %v207 = vpop.f32.mrb[0].mxu0
    %v208 = vadd.f32 0.0, %v207
    %v209 = vpop.f32.mrb[0].mxu0
    %210 = vmatprep.mubr.bf16.mxu0 0
    %211 = vmatmul.mubr.bf16.gmra.mrb[0].mxu0 %v89
    %v212 = vpop.f32.mrb[0].mxu0
    %v213 = vadd.f32 0.0, %v212
    %v214 = vpop.f32.mrb[0].mxu0
    %v215 = vpop.f32.mrb[0].mxu0
    %v216 = vpop.f32.mrb[0].mxu0
    %217 = vdwg.mxu0
    %v218 = vpack.c.bf16 %v192, %v189
    %v219 = vpack.c.bf16 %v200, %v197
    %v220 = vpack.c.bf16 %v208, %v205
    %v221 = vpack.c.bf16 %v213, %v213
    %v226 = vunpack.c.l.b16 %v218
    %v227 = vunpack.c.h.b16 %v218
    %v228 = vunpack.c.l.b16 %v219
    %v229 = vunpack.c.h.b16 %v219
    %v230 = vunpack.c.l.b16 %v220
    %v231 = vunpack.c.h.b16 %v220
    %v232 = vunpack.c.l.b16 %v221
    %v233 = vpack.c.b16 %v226, %v226
    %v234 = vpack.c.b16 %v227, %v227
    %v235 = vpack.c.b16 %v228, %v228
    %v236 = vpack.c.b16 %v229, %v229
    %v237 = vpack.c.b16 %v230, %v230
    %v238 = vpack.c.b16 %v231, %v231
    %v239 = vpack.c.b16 %v232, %v232
    %vm247 = vcmask 257024
    %248 = vst.msk [vmem:[#allocation2] sm:$0xf] %vm247, %v233
    %249 = vst.msk [vmem:[#allocation2 + $0x4] sm:$0xf] %vm247, %v234
    %250 = vst.msk [vmem:[#allocation2 + $0x8] sm:$0xf] %vm247, %v235
    %251 = vst.msk [vmem:[#allocation2 + $0xc] sm:$0xf] %vm247, %v236
    %252 = vst.msk [vmem:[#allocation2 + $0x10] sm:$0xf] %vm247, %v237
    %253 = vst.msk [vmem:[#allocation2 + $0x14] sm:$0xf] %vm247, %v238
    %254 = vst.msk [vmem:[#allocation2 + $0x18] sm:$0xf] %vm247, %v239
    %v255 = vld [vmem:[#allocation2] sm:$0xf]
    %v256 = vld [vmem:[#allocation2 + $0x4] sm:$0xf]
    %v257 = vld [vmem:[#allocation2 + $0x8] sm:$0xf]
    %v258 = vld [vmem:[#allocation2 + $0xc] sm:$0xf]
    %v259 = vld [vmem:[#allocation2 + $0x10] sm:$0xf]
    %v260 = vld [vmem:[#allocation2 + $0x14] sm:$0xf]
    %v261 = vld [vmem:[#allocation2 + $0x18] sm:$0x1]
    %v262 = vld [vmem:[#allocation2] sm:$0xe]
    %v263 = vld [vmem:[#allocation2 + $0x18] sm:$0x3]
    %v264 = vld [vmem:[#allocation2] sm:$0xc]
    %v271 = vunpack.c.l.b16 %v255
    %v272 = vunpack.c.l.b16 %v256
    %v273 = vunpack.c.l.b16 %v257
    %v274 = vunpack.c.l.b16 %v258
    %v275 = vunpack.c.l.b16 %v259
    %v276 = vunpack.c.l.b16 %v260
    %v277 = vpack.c.b16 %v272, %v271
    %v278 = vpack.c.b16 %v274, %v273
    %v279 = vpack.c.b16 %v276, %v275
    %v281 = vunpack.c.l.b16 %v261
    %v282 = vpack.c.b16 %v281, %v281
    %vm283 = vsmask.f32 7424
    %v285 = vshrl.u32 %v277, 16
    %v287 = vshll.u32 %v277, 16
    %v289 = vrot.slane %v287, 1
    %v290 = vor.u32 %v285, %v289
    %v292 = vshll.u32 %v278, 16
    %v294 = vrot.slane %v292, 1
    %v295 = vsel %vm283, %v290, %v294
    %v296 = vshrl.u32 %v278, 16
    %v298 = vor.u32 %v296, %v294
    %v300 = vshll.u32 %v279, 16
    %v302 = vrot.slane %v300, 1
    %v303 = vsel %vm283, %v298, %v302
    %v304 = vshrl.u32 %v279, 16
    %v306 = vor.u32 %v304, %v302
    %v308 = vshll.u32 %v282, 16
    %v310 = vrot.slane %v308, 1
    %v311 = vsel %vm283, %v306, %v310
    %312 = vrot.lane.b32.xlu0 %v295, 32
    %v313 = vpop.permute.xlu0 %312
    %314 = vrot.lane.b32.xlu0 %v303, 32
    %v315 = vpop.permute.xlu0 %314
    %316 = vrot.lane.b32.xlu0 %v311, 32
    %v317 = vpop.permute.xlu0 %316
    %v319 = vunpack.c.l.b16 %v262
    %v320 = vpack.c.b16 %v272, %v319
    %vm321 = vcmask 1046528
    %v322 = vrot.slane %v320, 1
    %v323 = vrot.slane %v278, 1
    %v324 = vsel %vm321, %v322, %v323
    %v325 = vrot.slane %v279, 1
    %v326 = vsel %vm321, %v323, %v325
    %v327 = vrot.slane %v282, 1
    %v328 = vsel %vm321, %v325, %v327
    %329 = vrot.lane.b32.xlu0 %v324, 64
    %v330 = vpop.permute.xlu0 %329
    %331 = vrot.lane.b32.xlu0 %v326, 64
    %v332 = vpop.permute.xlu0 %331
    %333 = vrot.lane.b32.xlu0 %v328, 64
    %v334 = vpop.permute.xlu0 %333
    %v336 = vunpack.c.l.b16 %v263
    %v337 = vpack.c.b16 %v336, %v336
    %vm338 = vsmask.f32 6400
    %v340 = vshrl.u32 %v320, 16
    %v342 = vrot.slane %v340, 1
    %v343 = vshll.u32 %v320, 16
    %v345 = vrot.slane %v343, 2
    %v346 = vor.u32 %v342, %v345
    %v347 = vrot.slane %v296, 1
    %v348 = vrot.slane %v292, 2
    %v349 = vor.u32 %v347, %v348
    %v350 = vsel %vm338, %v346, %v349
    %v351 = vrot.slane %v304, 1
    %v352 = vrot.slane %v300, 2
    %v353 = vor.u32 %v351, %v352
    %v354 = vsel %vm338, %v349, %v353
    %v356 = vshrl.u32 %v337, 16
    %v358 = vrot.slane %v356, 1
    %v359 = vshll.u32 %v337, 16
    %v361 = vrot.slane %v359, 2
    %v362 = vor.u32 %v358, %v361
    %v363 = vsel %vm338, %v353, %v362
    %364 = vrot.lane.b32.xlu0 %v350, 96
    %v365 = vpop.permute.xlu0 %364
    %366 = vrot.lane.b32.xlu0 %v354, 96
    %v367 = vpop.permute.xlu0 %366
    %368 = vrot.lane.b32.xlu0 %v363, 96
    %v369 = vpop.permute.xlu0 %368
    %v371 = vunpack.c.l.b16 %v264
    %v372 = vpack.c.b16 %v272, %v371
    %vm373 = vcmask 1045504
    %v374 = vrot.slane %v372, 2
    %v375 = vrot.slane %v278, 2
    %v376 = vsel %vm373, %v374, %v375
    %v377 = vrot.slane %v279, 2
    %v378 = vsel %vm373, %v375, %v377
    %v379 = vrot.slane %v337, 2
    %v380 = vsel %vm373, %v377, %v379
    %vm381 = vcmask 261120
    %v383 = vsel %vm381, %v277, %v313
    %v385 = vsel %vm381, %v278, %v315
    %v387 = vsel %vm381, %v279, %v317
    %vm388 = vcmask 523264
    %v390 = vsel %vm388, %v383, %v330
    %v392 = vsel %vm388, %v385, %v332
    %v394 = vsel %vm388, %v387, %v334
    %vm395 = vcmask 785408
    %v397 = vsel %vm395, %v390, %v365
    %v400 = vsel %vm395, %v392, %v367
    %v403 = vsel %vm395, %v394, %v369
    %v405 = vld [vmem:[%s2] sm:$0xf]
    %v406 = vld [vmem:[%s2 + $0x4] sm:$0xf]
    %v407 = vld [vmem:[%s2 + $0x8] sm:$0xf]
    %v408 = vld [vmem:[%s2 + $0xc] sm:$0xf]
    %v409 = vld [vmem:[%s2 + $0x10] sm:$0xf]
    %v410 = vld [vmem:[%s2 + $0x14] sm:$0xf]
    %v411 = vld [vmem:[%s2 + $0x18] sm:$0xf]
    %v412 = vld [vmem:[%s2 + $0x1c] sm:$0xf]
    %v413 = vld [vmem:[%s2 + $0x20] sm:$0xf]
    %v414 = vld [vmem:[%s2 + $0x24] sm:$0xf]
    %v415 = vld [vmem:[%s2 + $0x28] sm:$0xf]
    %v416 = vld [vmem:[%s2 + $0x2c] sm:$0xf]
    %v417 = vld [vmem:[%s2 + $0x30] sm:$0xf]
    %v418 = vld [vmem:[%s2 + $0x34] sm:$0xf]
    %v419 = vld [vmem:[%s2 + $0x38] sm:$0xf]
    %v420 = vld [vmem:[%s2 + $0x3c] sm:$0xf]
    %v421 = vld [vmem:[%s2 + $0x40] sm:$0xf]
    %v422 = vld [vmem:[%s2 + $0x44] sm:$0xf]
    %v423 = vld [vmem:[%s2 + $0x48] sm:$0xf]
    %v424 = vld [vmem:[%s2 + $0x4c] sm:$0xf]
    %v445 = vunpack.c.l.b16 %v405
    %v446 = vunpack.c.l.b16 %v406
    %v447 = vunpack.c.l.b16 %v407
    %v448 = vunpack.c.l.b16 %v408
    %v449 = vunpack.c.l.b16 %v409
    %v450 = vunpack.c.l.b16 %v410
    %v451 = vunpack.c.l.b16 %v411
    %v452 = vunpack.c.l.b16 %v412
    %v453 = vunpack.c.l.b16 %v413
    %v454 = vunpack.c.l.b16 %v414
    %v455 = vunpack.c.l.b16 %v415
    %v456 = vunpack.c.l.b16 %v416
    %v457 = vunpack.c.l.b16 %v417
    %v458 = vunpack.c.l.b16 %v418
    %v459 = vunpack.c.l.b16 %v419
    %v460 = vunpack.c.l.b16 %v420
    %v461 = vunpack.c.l.b16 %v421
    %v462 = vunpack.c.l.b16 %v422
    %v463 = vunpack.c.l.b16 %v423
    %v464 = vunpack.c.l.b16 %v424
    %v465 = vpack.c.b16 %v446, %v445
    %v466 = vpack.c.b16 %v448, %v447
    %v467 = vpack.c.b16 %v450, %v449
    %v468 = vpack.c.b16 %v452, %v451
    %v469 = vpack.c.b16 %v454, %v453
    %v470 = vpack.c.b16 %v456, %v455
    %v471 = vpack.c.b16 %v458, %v457
    %v472 = vpack.c.b16 %v460, %v459
    %v473 = vpack.c.b16 %v462, %v461
    %v474 = vpack.c.b16 %v464, %v463
    %v486 = vsel %vm381, %v376, 0
    %v489 = vsel %vm381, %v378, 0
    %v492 = vsel %vm381, %v380, 0
    %494 = vmatprep.subr.bf16.mxu0 0
    %495 = vmatpush1.bf16.msra.mxu0 %v465
    %496 = vmatprep.subr.bf16.mxu0 0
    %497 = vmatpush1.bf16.msra.mxu0 %v466
    %498 = vmatprep.subr.bf16.mxu0 0
    %499 = vmatpush1.bf16.msra.mxu0 %v467
    %500 = vmatprep.subr.bf16.mxu0 0
    %501 = vmatpush1.bf16.msra.mxu0 %v468
    %502 = vmatprep.subr.bf16.mxu0 0
    %503 = vmatpush1.bf16.msra.mxu0 %v469
    %504 = vmatprep.subr.bf16.mxu0 0
    %505 = vmatpush1.bf16.msra.mxu0 %v470
    %506 = vmatprep.subr.bf16.mxu0 0
    %507 = vmatpush1.bf16.msra.mxu0 %v471
    %508 = vmatprep.subr.bf16.mxu0 0
    %509 = vmatpush1.bf16.msra.mxu0 %v472
    %510 = vmatprep.subr.bf16.mxu0 0
    %511 = vmatpush1.bf16.msra.mxu0 %v473
    %512 = vmatprep.subr.bf16.mxu0 0
    %513 = vmatpush1.bf16.msra.mxu0 %v474
    %514 = vmatprep.subr.bf16.mxu0 0
    %515 = vmatpush1.bf16.msra.mxu0 0
    %516 = vmatprep.subr.bf16.mxu0 0
    %517 = vmatpush1.bf16.msra.mxu0 0
    %518 = vmatprep.subr.bf16.mxu0 0
    %519 = vmatpush1.bf16.msra.mxu0 0
    %520 = vmatprep.subr.bf16.mxu0 0
    %521 = vmatpush1.bf16.msra.mxu0 0
    %522 = vmatprep.subr.bf16.mxu0 0
    %523 = vmatpush1.bf16.msra.mxu0 0
    %524 = vmatprep.subr.bf16.mxu0 0
    %525 = vmatpush1.bf16.msra.mxu0 0
    %526 = vmatprep.mubr.bf16.mxu0 %v486
    %527 = vmatmul.mubr.bf16.gmra.mrb[0].mxu0 %v397
    %v528 = vpop.f32.mrb[0].mxu0
    %v529 = vadd.f32 0.0, %v528
    %v530 = vpop.f32.mrb[0].mxu0
    %v531 = vpop.f32.mrb[0].mxu0
    %v532 = vadd.f32 0.0, %v531
    %v533 = vpop.f32.mrb[0].mxu0
    %534 = vmatprep.mubr.bf16.mxu0 %v489
    %535 = vmatmul.mubr.bf16.gmra.mrb[0].mxu0 %v400
    %v536 = vpop.f32.mrb[0].mxu0
    %v537 = vadd.f32 0.0, %v536
    %v538 = vpop.f32.mrb[0].mxu0
    %v539 = vpop.f32.mrb[0].mxu0
    %v540 = vadd.f32 0.0, %v539
    %v541 = vpop.f32.mrb[0].mxu0
    %542 = vmatprep.mubr.bf16.mxu0 %v492
    %543 = vmatmul.mubr.bf16.gmra.mrb[0].mxu0 %v403
    %v544 = vpop.f32.mrb[0].mxu0
    %v545 = vadd.f32 0.0, %v544
    %v546 = vpop.f32.mrb[0].mxu0
    %v547 = vpop.f32.mrb[0].mxu0
    %v548 = vadd.f32 0.0, %v547
    %v549 = vpop.f32.mrb[0].mxu0
    %550 = vdwg.mxu0
    %v551 = vld [vmem:[%s3] sm:$0x1]
    %v553 = vlaneseq
    %v554 = vshrl.u32 %v553, 7
    %v555 = vsub.s32 0, %v554
    %v556 = vrot.slane %v551, %v555
    %v558 = vadd.f32 %v529, %v556
    %v559 = vadd.f32 %v532, %v556
    %v560 = vadd.f32 %v537, %v556
    %v561 = vadd.f32 %v540, %v556
    %v562 = vadd.f32 %v545, %v556
    %v563 = vadd.f32 %v548, %v556
    %v564 = vld [vmem:[#allocation3] sm:$0xff]
    %v565 = vld [vmem:[#allocation3 + $0x8] sm:$0xff]
    %v566 = vld [vmem:[#allocation3 + $0x10] sm:$0xff]
    %v567 = vmul.f32 %v558, %v564
    %v568 = vmul.f32 %v559, %v565
    %v569 = vmul.f32 %v560, %v566
    %v570 = vmul.f32 %v561, %v564
    %v571 = vmul.f32 %v562, %v565
    %v572 = vmul.f32 %v563, %v566
    %v573 = vmax.f32 %v567, %v569
    %v574 = vmax.f32 %v573, %v568
    %v575 = vrot.slane %v574, 4
    %v576 = vmax.f32 %v574, %v575
    %v577 = vrot.slane %v576, 2
    %v578 = vmax.f32 %v576, %v577
    %v579 = vrot.slane %v578, 1
    %v580 = vmax.f32 %v578, %v579
    %v581 = vmax.f32 %v570, %v572
    %v582 = vmax.f32 %v581, %v571
    %v583 = vrot.slane %v582, 4
    %v584 = vmax.f32 %v582, %v583
    %v585 = vrot.slane %v584, 2
    %v586 = vmax.f32 %v584, %v585
    %v587 = vrot.slane %v586, 1
    %v588 = vmax.f32 %v586, %v587
    %v589 = vmax.f32 %v580, 0.0
    %v590 = vmax.f32 %v588, 0.0
    %vm593 = vcmask 1041409
    %v594 = vsel %vm593, %v590, %v589
    %vm596 = vcmask 1041408
    %v597 = vsel %vm596, %v594, 0.0
    %v598 = vpack.c.bf16 %v597, %v597
    %v599 = vld [vmem:[%s5] sm:$0xf]
    %v600 = vld [vmem:[%s5 + $0x4] sm:$0xf]
    %v601 = vld [vmem:[%s5 + $0x8] sm:$0xf]
    %v602 = vld [vmem:[%s5 + $0xc] sm:$0xf]
    %v603 = vld [vmem:[%s5 + $0x10] sm:$0xf]
    %v604 = vld [vmem:[%s5 + $0x14] sm:$0xf]
    %v605 = vld [vmem:[%s5 + $0x18] sm:$0xf]
    %v606 = vld [vmem:[%s5 + $0x1c] sm:$0xf]
    %v607 = vld [vmem:[%s5 + $0x20] sm:$0xf]
    %v608 = vld [vmem:[%s5 + $0x24] sm:$0xf]
    %v609 = vld [vmem:[%s5 + $0x28] sm:$0xf]
    %v610 = vld [vmem:[%s5 + $0x2c] sm:$0xf]
    %v611 = vld [vmem:[%s5 + $0x30] sm:$0xf]
    %v612 = vld [vmem:[%s5 + $0x34] sm:$0xf]
    %v613 = vld [vmem:[%s5 + $0x38] sm:$0xf]
    %v614 = vld [vmem:[%s5 + $0x3c] sm:$0xf]
    %v615 = vld [vmem:[%s6] sm:$0x1]
    %v617 = vlaneseq
    %v618 = vshrl.u32 %v617, 7
    %v619 = vsub.s32 0, %v618
    %v620 = vrot.slane %v615, %v619
    %v638 = vunpack.c.l.b16 %v599
    %v639 = vunpack.c.l.b16 %v600
    %v640 = vunpack.c.l.b16 %v601
    %v641 = vunpack.c.l.b16 %v602
    %v642 = vunpack.c.l.b16 %v603
    %v643 = vunpack.c.l.b16 %v604
    %v644 = vunpack.c.l.b16 %v605
    %v645 = vunpack.c.l.b16 %v606
    %v646 = vunpack.c.l.b16 %v607
    %v647 = vunpack.c.l.b16 %v608
    %v648 = vunpack.c.l.b16 %v609
    %v649 = vunpack.c.l.b16 %v610
    %v650 = vunpack.c.l.b16 %v611
    %v651 = vunpack.c.l.b16 %v612
    %v652 = vunpack.c.l.b16 %v613
    %v653 = vunpack.c.l.b16 %v614
    %v654 = vpack.c.b16 %v639, %v638
    %v655 = vpack.c.b16 %v641, %v640
    %v656 = vpack.c.b16 %v643, %v642
    %v657 = vpack.c.b16 %v645, %v644
    %v658 = vpack.c.b16 %v647, %v646
    %v659 = vpack.c.b16 %v649, %v648
    %v660 = vpack.c.b16 %v651, %v650
    %v661 = vpack.c.b16 %v653, %v652
    %670 = vmatprep.subr.bf16.mxu0 0
    %671 = vmatpush1.bf16.msra.mxu0 %v654
    %672 = vmatprep.subr.bf16.mxu0 0
    %673 = vmatpush1.bf16.msra.mxu0 %v655
    %674 = vmatprep.subr.bf16.mxu0 0
    %675 = vmatpush1.bf16.msra.mxu0 %v656
    %676 = vmatprep.subr.bf16.mxu0 0
    %677 = vmatpush1.bf16.msra.mxu0 %v657
    %678 = vmatprep.subr.bf16.mxu0 0
    %679 = vmatpush1.bf16.msra.mxu0 %v658
    %680 = vmatprep.subr.bf16.mxu0 0
    %681 = vmatpush1.bf16.msra.mxu0 %v659
    %682 = vmatprep.subr.bf16.mxu0 0
    %683 = vmatpush1.bf16.msra.mxu0 %v660
    %684 = vmatprep.subr.bf16.mxu0 0
    %685 = vmatpush1.bf16.msra.mxu0 %v661
    %686 = vmatprep.subr.bf16.mxu0 0
    %687 = vmatpush1.bf16.msra.mxu0 0
    %688 = vmatprep.subr.bf16.mxu0 0
    %689 = vmatpush1.bf16.msra.mxu0 0
    %690 = vmatprep.subr.bf16.mxu0 0
    %691 = vmatpush1.bf16.msra.mxu0 0
    %692 = vmatprep.subr.bf16.mxu0 0
    %693 = vmatpush1.bf16.msra.mxu0 0
    %694 = vmatprep.subr.bf16.mxu0 0
    %695 = vmatpush1.bf16.msra.mxu0 0
    %696 = vmatprep.subr.bf16.mxu0 0
    %697 = vmatpush1.bf16.msra.mxu0 0
    %698 = vmatprep.subr.bf16.mxu0 0
    %699 = vmatpush1.bf16.msra.mxu0 0
    %700 = vmatprep.subr.bf16.mxu0 0
    %701 = vmatpush1.bf16.msra.mxu0 0
    %702 = vmatprep.mubr.bf16.mxu0 0
    %703 = vmatmul.mubr.bf16.gmra.mrb[0].mxu0 %v598
    %v704 = vpop.f32.mrb[0].mxu0
    %v705 = vadd.f32 %v620, %v704
    %v706 = vpop.f32.mrb[0].mxu0
    %v707 = vpop.f32.mrb[0].mxu0
    %v708 = vpop.f32.mrb[0].mxu0
    %709 = vdwg.mxu0
    %710 = vst [vmem:[#allocation6] sm:$0xff] %v705
    // Predicated region
    $region34: #{tpu_custom_call.1} parent=1 // pred_check
      _
    $region35: #{tpu_custom_call.1} parent=1 // pred_check_branch
      %712 = sbr.rel (0) target = $region37
    $region36: #{tpu_custom_call.1} parent=1 // pred_region
      %s714 = ssub.s32 128, 128
      %715 = vsyncadd [#allocation5], %s714
      %s717 = sshll.u32 [#allocation6], 4
      %s718 = int_to_ptr.vmem [resolvable:$true] %s717
      %720 = dma.vmem_to_hbm [thread:$0]  %s718, 128, %s7, [#allocation5]
    $region37: #{tpu_custom_call.1} parent=1 // pred_fallthru
      _
    // Predicated region
    $region38: #{tpu_custom_call.1} parent=1 // pred_check
      _
    $region39: #{tpu_custom_call.1} parent=1 // pred_check_branch
      %722 = sbr.rel (0) target = $region41
    $region40: #{tpu_custom_call.1} parent=1 // pred_region
      %723 = dma.done [#allocation5], 128
    $region41: #{tpu_custom_call.1} parent=1 // pred_fallthru
      _
    %724 = vsyncpa [#allocation4], 1
    %725 = vsyncpa [#allocation5], 1

</llo_original>
